<compile_context>
chip_gen: v7x
topology: tpu7x:2x2x1
jax: 0.10.0
libtpu: 0.0.40
codegen_flags: <defaults>
</compile_context>

<pallas_src>
import functools

import jax
import jax.numpy as jnp
from jax.experimental import pallas as pl
from jax.experimental.pallas import tpu as pltpu


def _round_up(n, m):
    return ((n + m - 1) // m) * m


def _layernorm_kernel(x_ref, g_ref, b_ref, o_ref, *, eps, n_features):
    # Tile shapes: x (TM, D), gamma/beta (1, D), out (TM, D).
    x = x_ref[...].astype(jnp.float32)
    mu = jnp.mean(x, axis=-1, keepdims=True)
    diff = x - mu
    # torch.Tensor.std(): unbiased estimator (divide by N-1).
    var = jnp.sum(diff * diff, axis=-1, keepdims=True) / jnp.float32(n_features - 1)
    std = jnp.sqrt(var)
    g = g_ref[...].astype(jnp.float32)
    b = b_ref[...].astype(jnp.float32)
    y = g * diff / (std + jnp.float32(eps)) + b
    o_ref[...] = y.astype(o_ref.dtype)


def layernorm(x, gamma, beta, eps=1e-6, block_rows=256):
    """LayerNorm over the last axis of x (any leading shape)."""
    orig_shape = x.shape
    D = orig_shape[-1]
    M = 1
    for s in orig_shape[:-1]:
        M *= s
    x2d = x.reshape(M, D)

    # Row tile: multiple of 8 (sublane) so the BlockSpec is legal, large enough
    # to pipeline DMAs, small enough to bound per-step VMEM on v7x.
    tm = min(block_rows, _round_up(M, 8))
    m_pad = _round_up(M, tm)
    if m_pad != M:
        # Zero rows normalize to finite values (b) and are sliced off below.
        x2d = jnp.pad(x2d, ((0, m_pad - M), (0, 0)))

    out = pl.pallas_call(
        functools.partial(_layernorm_kernel, eps=eps, n_features=D),
        out_shape=jax.ShapeDtypeStruct((m_pad, D), x.dtype),
        grid=(m_pad // tm,),
        in_specs=[
            pl.BlockSpec((tm, D), lambda i: (i, 0)),   # row tile of x
            pl.BlockSpec((1, D), lambda i: (0, 0)),    # gamma, shared
            pl.BlockSpec((1, D), lambda i: (0, 0)),    # beta, shared
        ],
        out_specs=pl.BlockSpec((tm, D), lambda i: (i, 0)),
        compiler_params=pltpu.CompilerParams(
            dimension_semantics=("parallel",),
            vmem_limit_bytes=64 * 1024 * 1024,
        ),
    )(x2d, gamma.reshape(1, D), beta.reshape(1, D))

    return out[:M].reshape(orig_shape)


def layernorm_ref(x, gamma, beta, eps=1e-6):
    """Pure-JAX reference matching the PyTorch module."""
    x32 = x.astype(jnp.float32)
    mu = jnp.mean(x32, axis=-1, keepdims=True)
    var = jnp.sum((x32 - mu) ** 2, axis=-1, keepdims=True) / (x.shape[-1] - 1)
    std = jnp.sqrt(var)
    return (gamma * (x32 - mu) / (std + eps) + beta).astype(x.dtype)


if __name__ == "__main__":
    key = jax.random.PRNGKey(0)
    k1, k2, k3, k4 = jax.random.split(key, 4)

    # Case 1: transformer-like activation (B, T, D) = (2, 8, 32).
    B, T, D = 2, 8, 32
    x = jax.random.normal(k1, (B, T, D), jnp.float32)
    gamma = 1.0 + 0.1 * jax.random.normal(k2, (D,), jnp.float32)
    beta = 0.1 * jax.random.normal(k3, (D,), jnp.float32)

    out = layernorm(x, gamma, beta)
    out = jax.block_until_ready(out)
    assert out.shape == (B, T, D) and out.dtype == jnp.float32
    ref = layernorm_ref(x, gamma, beta)
    assert jnp.max(jnp.abs(out - ref)) < 1e-4, "mismatch vs reference (case 1)"

    # Case 2: lane-dense D=128 with row count not a multiple of 8 (pad path).
    D2 = 128
    x2 = jax.random.normal(k4, (3, 5, D2), jnp.float32)
    g2 = jnp.ones((D2,), jnp.float32)
    b2 = jnp.zeros((D2,), jnp.float32)
    out2 = jax.block_until_ready(layernorm(x2, g2, b2))
    ref2 = layernorm_ref(x2, g2, b2)
    assert jnp.max(jnp.abs(out2 - ref2)) < 1e-4, "mismatch vs reference (case 2)"

    print("KERNEL_OK")
</pallas_src>

<mosaic_0001>
module attributes {stable_mosaic.version = 11 : i64} {
  func.func @_layernorm_kernel(%arg0: i32, %arg1: memref<16x32xf32, #tpu.memory_space<vmem>>, %arg2: memref<1x32xf32, #tpu.memory_space<vmem>>, %arg3: memref<1x32xf32, #tpu.memory_space<vmem>>, %arg4: memref<16x32xf32, #tpu.memory_space<vmem>>) attributes {dimension_semantics = [#tpu.dimension_semantics<parallel>], iteration_bounds = array<i64: 1>, scalar_prefetch = 0 : i64, scratch_operands = 0 : i64, tpu.core_type = #tpu.core_type<tc>, window_params = [{transform_indices = @transform_0, window_bounds = array<i64: 16, 32>}, {pipeline_mode = #tpu.pipeline_mode<synchronous>, transform_indices = @transform_1, window_bounds = array<i64: 1, 32>}, {pipeline_mode = #tpu.pipeline_mode<synchronous>, transform_indices = @transform_2, window_bounds = array<i64: 1, 32>}, {transform_indices = @transform_3, window_bounds = array<i64: 16, 32>}]} {
    %c0 = arith.constant 0 : index
    %c0_0 = arith.constant 0 : index
    %0 = vector.load %arg1[%c0, %c0_0] : memref<16x32xf32, #tpu.memory_space<vmem>>, vector<16x32xf32>
    %cst = arith.constant dense<0.000000e+00> : vector<16xf32>
    %1 = vector.multi_reduction <add>, %0, %cst [1] : vector<16x32xf32> to vector<16xf32>
    %2 = vector.shape_cast %1 : vector<16xf32> to vector<16x1xf32>
    %cst_1 = arith.constant 3.200000e+01 : f32
    %3 = vector.broadcast %cst_1 : f32 to vector<16x1xf32>
    %4 = arith.divf %2, %3 : vector<16x1xf32>
    %5 = vector.broadcast %4 : vector<16x1xf32> to vector<16x32xf32>
    %6 = arith.subf %0, %5 : vector<16x32xf32>
    %7 = arith.mulf %6, %6 : vector<16x32xf32>
    %cst_2 = arith.constant dense<0.000000e+00> : vector<16xf32>
    %8 = vector.multi_reduction <add>, %7, %cst_2 [1] : vector<16x32xf32> to vector<16xf32>
    %9 = vector.shape_cast %8 : vector<16xf32> to vector<16x1xf32>
    %cst_3 = arith.constant 3.100000e+01 : f32
    %10 = vector.broadcast %cst_3 : f32 to vector<16x1xf32>
    %11 = arith.divf %9, %10 : vector<16x1xf32>
    %12 = math.sqrt %11 : vector<16x1xf32>
    %c0_4 = arith.constant 0 : index
    %c0_5 = arith.constant 0 : index
    %13 = vector.load %arg2[%c0_4, %c0_5] : memref<1x32xf32, #tpu.memory_space<vmem>>, vector<1x32xf32>
    %c0_6 = arith.constant 0 : index
    %c0_7 = arith.constant 0 : index
    %14 = vector.load %arg3[%c0_6, %c0_7] : memref<1x32xf32, #tpu.memory_space<vmem>>, vector<1x32xf32>
    %15 = vector.broadcast %13 : vector<1x32xf32> to vector<16x32xf32>
    %16 = arith.mulf %15, %6 : vector<16x32xf32>
    %cst_8 = arith.constant 9.99999997E-7 : f32
    %17 = vector.broadcast %cst_8 : f32 to vector<16x1xf32>
    %18 = arith.addf %12, %17 : vector<16x1xf32>
    %19 = vector.broadcast %18 : vector<16x1xf32> to vector<16x32xf32>
    %20 = arith.divf %16, %19 : vector<16x32xf32>
    %21 = vector.broadcast %14 : vector<1x32xf32> to vector<16x32xf32>
    %22 = arith.addf %20, %21 : vector<16x32xf32>
    %c0_9 = arith.constant 0 : index
    %c0_10 = arith.constant 0 : index
    %23 = vector.load %arg4[%c0_9, %c0_10] : memref<16x32xf32, #tpu.memory_space<vmem>>, vector<16x32xf32>
    tpu.vector_store %arg4[%c0_9, %c0_10], %22 {strides = array<i32>} : memref<16x32xf32, #tpu.memory_space<vmem>>, vector<16x32xf32>,
    return
  }
  func.func @transform_0(%arg0: i32) -> (i32, i32) {
    %c0_i32 = arith.constant 0 : i32
    %c0_i32_0 = arith.constant 0 : i32
    return %arg0, %c0_i32 : i32, i32
  }
  func.func @transform_1(%arg0: i32) -> (i32, i32) {
    %c0_i32 = arith.constant 0 : i32
    %c0_i32_0 = arith.constant 0 : i32
    %c0_i32_1 = arith.constant 0 : i32
    return %c0_i32, %c0_i32_0 : i32, i32
  }
  func.func @transform_2(%arg0: i32) -> (i32, i32) {
    %c0_i32 = arith.constant 0 : i32
    %c0_i32_0 = arith.constant 0 : i32
    %c0_i32_1 = arith.constant 0 : i32
    return %c0_i32, %c0_i32_0 : i32, i32
  }
  func.func @transform_3(%arg0: i32) -> (i32, i32) {
    %c0_i32 = arith.constant 0 : i32
    %c0_i32_0 = arith.constant 0 : i32
    return %arg0, %c0_i32 : i32, i32
  }
}

</mosaic_0001>

<llo_original>
// kernel: tpu_custom_call.1
$region0: #{tpu_custom_call.1}
  #allocation0 [shape = 'u32[]', space=smem, size = 0x4, offset = 0x4, fixed_abs, tag = 'smem constant byte address 0x4 - core index']
  #allocation1 [shape = 'u32[144,128]{1,0:T(1,128)}', space=vmem, size = 0x12000, scoped, tag = 'internal scratch']
  %s0 = inlined_call_operand.hbm [shape: f32[16,32], index: 0, kind: input, shape index: {}]
  %s1 = inlined_call_operand.hbm [shape: f32[1,32], index: 1, kind: input, shape index: {}]
  %s2 = inlined_call_operand.hbm [shape: f32[1,32], index: 2, kind: input, shape index: {}]
  %s3 = inlined_call_operand.hbm [shape: f32[16,32], index: 3, kind: output, shape index: {}]
  %s4 = sld [smem:[#allocation0]]
  $region34: #{tpu_custom_call.1} parent=0
    _
  %s6 = ssub.s32 1, %s4
  %s7 = scalar_select 0, %s6, %s4
  $region1: #{tpu_custom_call.1} parent=0
    #allocation2 [shape = 'u8[8192]{0}', space=vmem, size = 0x2000, scoped, tag = 'input window, operand 0, single buffered']
    #allocation3 [shape = 's32[1]{0}', space=sflag, size = 0x4, scoped, tag = 'scoped memory for tpu_custom_call.1']
    #allocation4 [shape = 's32[1]{0}', space=sflag, size = 0x4, scoped, tag = 'scoped memory for tpu_custom_call.1']
    #allocation5 [shape = 'u8[512]{0}', space=vmem, size = 0x400, scoped, tag = 'input window, operand 1, single buffered']
    #allocation6 [shape = 's32[1]{0}', space=sflag, size = 0x4, scoped, tag = 'scoped memory for tpu_custom_call.1']
    #allocation7 [shape = 'u8[512]{0}', space=vmem, size = 0x400, scoped, tag = 'input window, operand 2, single buffered']
    #allocation8 [shape = 'u8[8192]{0}', space=vmem, size = 0x2000, scoped, tag = 'output window, operand 0, single buffered']
    %8 = vsyncpa [#allocation3], 0
    %9 = vsyncpa [#allocation6], 0
    %10 = vsyncpa [#allocation4], 0
    // Predicated region
    $region2: #{tpu_custom_call.1} parent=1 // pred_check
      _
    $region3: #{tpu_custom_call.1} parent=1 // pred_check_branch
      %12 = sbr.rel (0) target = $region5
    $region4: #{tpu_custom_call.1} parent=1 // pred_region
      %s14 = ssub.s32 256, 256
      %15 = vsyncadd [#allocation3], %s14
      %s16 = sshll.u32 [#allocation2], 4
      %s17 = int_to_ptr.vmem [resolvable:$true] %s16
      %22 = dma.hbm_to_vmem [thread:$0]  %s0, 256, %s17, [#allocation3], 128, 128, 8
    $region5: #{tpu_custom_call.1} parent=1 // pred_fallthru
      _
    // Predicated region
    $region6: #{tpu_custom_call.1} parent=1 // pred_check
      _
    $region7: #{tpu_custom_call.1} parent=1 // pred_check_branch
      %24 = sbr.rel (0) target = $region9
    $region8: #{tpu_custom_call.1} parent=1 // pred_region
      %s26 = ssub.s32 16, 16
      %27 = vsyncadd [#allocation6], %s26
      %s29 = sshll.u32 [#allocation5], 4
      %s30 = int_to_ptr.vmem [resolvable:$true] %s29
      %32 = dma.hbm_to_vmem [thread:$0]  %s1, 16, %s30, [#allocation6]
    $region9: #{tpu_custom_call.1} parent=1 // pred_fallthru
      _
    // Predicated region
    $region10: #{tpu_custom_call.1} parent=1 // pred_check
      _
    $region11: #{tpu_custom_call.1} parent=1 // pred_check_branch
      %34 = sbr.rel (0) target = $region13
    $region12: #{tpu_custom_call.1} parent=1 // pred_region
      %s36 = ssub.s32 16, 16
      %37 = vsyncadd [#allocation6], %s36
      %s39 = sshll.u32 [#allocation7], 4
      %s40 = int_to_ptr.vmem [resolvable:$true] %s39
      %42 = dma.hbm_to_vmem [thread:$0]  %s2, 16, %s40, [#allocation6]
    $region13: #{tpu_custom_call.1} parent=1 // pred_fallthru
      _
    // Predicated region
    $region14: #{tpu_custom_call.1} parent=1 // pred_check
      _
    $region15: #{tpu_custom_call.1} parent=1 // pred_check_branch
      %44 = sbr.rel (0) target = $region17
    $region16: #{tpu_custom_call.1} parent=1 // pred_region
      %45 = dma.done [#allocation3], 256
    $region17: #{tpu_custom_call.1} parent=1 // pred_fallthru
      _
    // Predicated region
    $region18: #{tpu_custom_call.1} parent=1 // pred_check
      _
    $region19: #{tpu_custom_call.1} parent=1 // pred_check_branch
      %47 = sbr.rel (0) target = $region21
    $region20: #{tpu_custom_call.1} parent=1 // pred_region
      %48 = dma.done [#allocation6], 16
    $region21: #{tpu_custom_call.1} parent=1 // pred_fallthru
      _
    // Predicated region
    $region22: #{tpu_custom_call.1} parent=1 // pred_check
      _
    $region23: #{tpu_custom_call.1} parent=1 // pred_check_branch
      %50 = sbr.rel (0) target = $region25
    $region24: #{tpu_custom_call.1} parent=1 // pred_region
      %51 = dma.done [#allocation6], 16
    $region25: #{tpu_custom_call.1} parent=1 // pred_fallthru
      _
    %v52 = vld [vmem:[#allocation2] sm:$0xff]
    %v53 = vld [vmem:[#allocation2 + $0x8] sm:$0xff]
    %vm54 = vcmask 261120
    %v55 = vsel %vm54, %v52, 0.0
    %56 = vadd.xlane.f32.xlu0 %v55
    %v57 = vpop.xlane.xlu0 %56
    %v58 = vsel %vm54, %v53, 0.0
    %59 = vadd.xlane.f32.xlu0 %v58
    %v60 = vpop.xlane.xlu0 %59
    %v61 = vrcp.pop 32.0
    %v62 = vmul.f32 %v57, %v61
    %v63 = vmul.f32 %v60, %v61
    %v64 = vsub.f32 %v52, %v62
    %v65 = vsub.f32 %v53, %v63
    %v66 = vmul.f32 %v64, %v64
    %v67 = vmul.f32 %v65, %v65
    %v68 = vsel %vm54, %v66, 0.0
    %69 = vadd.xlane.f32.xlu0 %v68
    %v70 = vpop.xlane.xlu0 %69
    %v71 = vsel %vm54, %v67, 0.0
    %72 = vadd.xlane.f32.xlu0 %v71
    %v73 = vpop.xlane.xlu0 %72
    %v74 = vrcp.pop 31.0
    %v75 = vmul.f32 %v70, %v74
    %v76 = vmul.f32 %v73, %v74
    %v77 = vrsqrt.pop %v75
    %v78 = vmul.f32 %v75, %v77
    %vm79 = vcmp.eq.f32.partialorder %v75, inf
    %v80 = vsel %vm79, %v75, %v78
    %vm81 = vcmp.eq.f32.partialorder %v75, 0.0
    %v82 = vand.u32 %v75, 2147483648
    %v83 = vsel %vm81, %v82, %v80
    %v84 = vrsqrt.pop %v76
    %v85 = vmul.f32 %v76, %v84
    %vm86 = vcmp.eq.f32.partialorder %v76, inf
    %v87 = vsel %vm86, %v76, %v85
    %vm88 = vcmp.eq.f32.partialorder %v76, 0.0
    %v89 = vand.u32 %v76, 2147483648
    %v90 = vsel %vm88, %v89, %v87
    %v91 = vld [vmem:[#allocation5] sm:$0x1]
    %v92 = vld [vmem:[#allocation7] sm:$0x1]
    %v94 = vlaneseq
    %v95 = vshrl.u32 %v94, 7
    %v96 = vsub.s32 0, %v95
    %v97 = vrot.slane %v91, %v96
    %v99 = vmul.f32 %v97, %v64
    %v100 = vmul.f32 %v97, %v65
    %v101 = vadd.f32 %v83, 1e-06
    %v102 = vadd.f32 %v90, 1e-06
    %v103 = vrcp.pop %v101
    %v104 = vmul.f32 %v99, %v103
    %v105 = vrcp.pop %v102
    %v106 = vmul.f32 %v100, %v105
    %v108 = vlaneseq
    %v109 = vshrl.u32 %v108, 7
    %v110 = vsub.s32 0, %v109
    %v111 = vrot.slane %v92, %v110
    %v113 = vadd.f32 %v104, %v111
    %v114 = vadd.f32 %v106, %v111
    %115 = vst.msk [vmem:[#allocation8] sm:$0xff] %vm54, %v113
    %116 = vst.msk [vmem:[#allocation8 + $0x8] sm:$0xff] %vm54, %v114
    // Predicated region
    $region26: #{tpu_custom_call.1} parent=1 // pred_check
      _
    $region27: #{tpu_custom_call.1} parent=1 // pred_check_branch
      %118 = sbr.rel (0) target = $region29
    $region28: #{tpu_custom_call.1} parent=1 // pred_region
      %s120 = ssub.s32 256, 256
      %121 = vsyncadd [#allocation4], %s120
      %s122 = sshll.u32 [#allocation8], 4
      %s123 = int_to_ptr.vmem [resolvable:$true] %s122
      %128 = dma.vmem_to_hbm [thread:$0]  %s123, 256, %s3, [#allocation4], 128, 128, 8
    $region29: #{tpu_custom_call.1} parent=1 // pred_fallthru
      _
    // Predicated region
    $region30: #{tpu_custom_call.1} parent=1 // pred_check
      _
    $region31: #{tpu_custom_call.1} parent=1 // pred_check_branch
      %130 = sbr.rel (0) target = $region33
    $region32: #{tpu_custom_call.1} parent=1 // pred_region
      %131 = dma.done [#allocation4], 256
    $region33: #{tpu_custom_call.1} parent=1 // pred_fallthru
      _
    %132 = vsyncpa [#allocation3], 1
    %133 = vsyncpa [#allocation6], 1
    %134 = vsyncpa [#allocation4], 1

</llo_original>
